<compile_context>
chip_gen: v6e
topology: v6e:2x2x1
jax: 0.10.0
libtpu: 0.0.40
codegen_flags: <defaults>
</compile_context>

<pallas_src>
import math

import jax
import jax.numpy as jnp
from jax.experimental import pallas as pl
from jax.experimental.pallas import tpu as pltpu


# -----------------------------------------------------------------------------
# Init-time constant: the (max_len, d_model) sin/cos table (== PyTorch __init__)
# -----------------------------------------------------------------------------
def make_positional_encoding_table(d_model, max_len=25):
    # The PyTorch reference only supports even d_model (odd d_model would fail
    # on the pe[:, 1::2] assignment); mirror that contract.
    assert d_model % 2 == 0, "PositionalEncoding requires an even d_model"
    position = jnp.arange(max_len, dtype=jnp.float32)[:, None]            # (max_len, 1)
    div_term = jnp.exp(
        jnp.arange(0, d_model, 2, dtype=jnp.float32)
        * (-math.log(10000.0) / d_model)
    )                                                                     # (d_model//2,)
    ang = position * div_term                                             # (max_len, d_model//2)
    pe = jnp.zeros((max_len, d_model), dtype=jnp.float32)
    pe = pe.at[:, 0::2].set(jnp.sin(ang))
    pe = pe.at[:, 1::2].set(jnp.cos(ang))
    return pe


# -----------------------------------------------------------------------------
# Kernel: broadcast-add the flattened PE slab onto the flattened x slab
# -----------------------------------------------------------------------------
def _pe_add_kernel(x_ref, pe_ref, o_ref):
    # x block: (B, L); pe block: (1, L) -> broadcasts over the batch rows.
    o_ref[...] = x_ref[...] + pe_ref[...]


def _largest_divisor_at_most(n, cap):
    best = 1
    for d in range(1, n + 1):
        if n % d == 0 and d <= cap:
            best = d
    return best


def positional_encoding(x, pe_table, *, max_block_bytes=4 * 1024 * 1024):
    """x: (B, S, D); pe_table: (max_len, D), S <= max_len. Returns x + pe[:S]."""
    B, S, D = x.shape
    total = S * D
    itemsize = jnp.dtype(x.dtype).itemsize

    # Static slice + flatten of the tiny table (<= max_len*D elements), done
    # once per traced shape; cast to x.dtype so the in-kernel add is native.
    pe_flat = pe_table[:S].astype(x.dtype).reshape(1, total)
    x_flat = x.reshape(B, total)  # lane-dense view: last dim = S*D lanes

    block_bytes = B * total * itemsize
    if block_bytes <= max_block_bytes:
        # ---- Single block, no grid: zero pipeline-step overhead. ----
        out = pl.pallas_call(
            _pe_add_kernel,
            out_shape=jax.ShapeDtypeStruct((B, total), x.dtype),
            in_specs=[
                pl.BlockSpec((B, total), lambda: (0, 0)),   # whole x slab
                pl.BlockSpec((1, total), lambda: (0, 0)),   # whole PE slab
            ],
            out_specs=pl.BlockSpec((B, total), lambda: (0, 0)),
        )(x_flat, pe_flat)
    else:
        # ---- Large-shape fallback: tile the lane axis along S (even split) so
        # blocks stay well under v7x's 64 MiB / v5e's 16 MiB scoped VMEM. ----
        st_cap = max(1, max_block_bytes // (B * D * itemsize))
        St = _largest_divisor_at_most(S, st_cap)
        cols = St * D
        if cols % 128 != 0:  # keep Mosaic's (8,128) block constraint satisfied
            St, cols = 1, D
        grid = (S // St,)
        out = pl.pallas_call(
            _pe_add_kernel,
            out_shape=jax.ShapeDtypeStruct((B, total), x.dtype),
            grid_spec=pltpu.PrefetchScalarGridSpec(
                num_scalar_prefetch=0,
                grid=grid,
                in_specs=[
                    pl.BlockSpec((B, cols), lambda c: (0, c)),
                    pl.BlockSpec((1, cols), lambda c: (0, c)),
                ],
                out_specs=pl.BlockSpec((B, cols), lambda c: (0, c)),
            ),
            compiler_params=pltpu.CompilerParams(
                # Chunks are independent and each is >= max_block_bytes-scale,
                # so the megacore split pays off on v7x; no-op on v5e/v6e.
                dimension_semantics=("parallel",),
            ),
        )(x_flat, pe_flat)

    return out.reshape(B, S, D)


# -----------------------------------------------------------------------------
# Demo / self-check
# -----------------------------------------------------------------------------
if __name__ == "__main__":
    key = jax.random.PRNGKey(0)

    B, S, D, MAX_LEN = 4, 16, 128, 25   # d_model lane-aligned (multiple of 128)
    x = jax.random.normal(key, (B, S, D), dtype=jnp.float32)
    pe_table = make_positional_encoding_table(D, MAX_LEN)

    fwd = jax.jit(positional_encoding)
    out = fwd(x, pe_table)
    out = jax.block_until_ready(out)

    # Pure-JAX reference: out = x + pe[:, :S, :]
    ref = x + pe_table[None, :S, :]
    assert out.shape == (B, S, D) and out.dtype == jnp.float32
    assert jnp.allclose(out, ref, atol=1e-6, rtol=1e-6)

    print("KERNEL_OK")
</pallas_src>

<mosaic_0001>
module attributes {stable_mosaic.version = 11 : i64} {
  func.func @_pe_add_kernel(%arg0: memref<4x2048xf32, #tpu.memory_space<vmem>>, %arg1: memref<1x2048xf32, #tpu.memory_space<vmem>>, %arg2: memref<4x2048xf32, #tpu.memory_space<vmem>>) attributes {dimension_semantics = [], scalar_prefetch = 0 : i64, scratch_operands = 0 : i64, tpu.core_type = #tpu.core_type<tc>} {
    %c0 = arith.constant 0 : index
    %c0_0 = arith.constant 0 : index
    %0 = vector.load %arg0[%c0, %c0_0] : memref<4x2048xf32, #tpu.memory_space<vmem>>, vector<4x2048xf32>
    %c0_1 = arith.constant 0 : index
    %c0_2 = arith.constant 0 : index
    %1 = vector.load %arg1[%c0_1, %c0_2] : memref<1x2048xf32, #tpu.memory_space<vmem>>, vector<1x2048xf32>
    %2 = vector.broadcast %1 : vector<1x2048xf32> to vector<4x2048xf32>
    %3 = arith.addf %0, %2 : vector<4x2048xf32>
    %c0_3 = arith.constant 0 : index
    %c0_4 = arith.constant 0 : index
    %4 = vector.load %arg2[%c0_3, %c0_4] : memref<4x2048xf32, #tpu.memory_space<vmem>>, vector<4x2048xf32>
    tpu.vector_store %arg2[%c0_3, %c0_4], %3 {strides = array<i32>} : memref<4x2048xf32, #tpu.memory_space<vmem>>, vector<4x2048xf32>,
    return
  }
}

</mosaic_0001>

<llo_original>
// kernel: positional_encoding.1
$region0: #{positional_encoding.1}
  #allocation0 [shape = 'u32[]', space=smem, size = 0x4, offset = 0x4, fixed_abs, tag = 'smem constant byte address 0x4 - core index']
  #allocation1 [shape = 'u32[144,128]{1,0:T(1,128)}', space=vmem, size = 0x12000, scoped, tag = 'internal scratch']
  %s0 = inlined_call_operand.vmem [shape: f32[4,2048], index: 0, kind: input, shape index: {}]
  %s1 = inlined_call_operand.vmem [shape: f32[1,2048], index: 1, kind: input, shape index: {}]
  %s2 = inlined_call_operand.vmem [shape: f32[4,2048], index: 2, kind: output, shape index: {}]
  %s3 = sld [smem:[#allocation0]]
  $region18: #{positional_encoding.1} parent=0
    _
  %s5 = ssub.s32 1, %s3
  %s6 = scalar_select 0, %s5, %s3
  // Predicated region
  $region2: #{positional_encoding.1} parent=0 // pred_check
    _
  $region3: #{positional_encoding.1} parent=0 // pred_check_branch
    %8 = sbr.rel (0) target = $region5
  $region4: #{positional_encoding.1} parent=0 // pred_region
    _
  $region5: #{positional_encoding.1} parent=0 // pred_fallthru
    _
  // Predicated region
  $region6: #{positional_encoding.1} parent=0 // pred_check
    _
  $region7: #{positional_encoding.1} parent=0 // pred_check_branch
    %10 = sbr.rel (0) target = $region9
  $region8: #{positional_encoding.1} parent=0 // pred_region
    _
  $region9: #{positional_encoding.1} parent=0 // pred_fallthru
    _
  %v11 = vld [vmem:[%s0] sm:$0xff]
  %v12 = vld [vmem:[%s0 + $0x8] sm:$0xff]
  %v13 = vld [vmem:[%s0 + $0x10] sm:$0xff]
  %v14 = vld [vmem:[%s0 + $0x18] sm:$0xff]
  %v15 = vld [vmem:[%s0 + $0x20] sm:$0xff]
  %v16 = vld [vmem:[%s0 + $0x28] sm:$0xff]
  %v17 = vld [vmem:[%s0 + $0x30] sm:$0xff]
  %v18 = vld [vmem:[%s0 + $0x38] sm:$0xff]
  %v19 = vld [vmem:[%s1] sm:$0xff]
  %v20 = vld [vmem:[%s1 + $0x8] sm:$0xff]
  %v23 = vlaneseq
  %v24 = vshrl.u32 %v23, 7
  %v25 = vsub.s32 0, %v24
  %v26 = vrot.slane %v19, %v25
  %v27 = vlaneseq
  %v28 = vshrl.u32 %v27, 7
  %v29 = vsub.s32 1, %v28
  %v30 = vrot.slane %v19, %v29
  %v31 = vlaneseq
  %v32 = vshrl.u32 %v31, 7
  %v33 = vsub.s32 2, %v32
  %v34 = vrot.slane %v19, %v33
  %v35 = vlaneseq
  %v36 = vshrl.u32 %v35, 7
  %v37 = vsub.s32 3, %v36
  %v38 = vrot.slane %v19, %v37
  %v39 = vlaneseq
  %v40 = vshrl.u32 %v39, 7
  %v41 = vsub.s32 4, %v40
  %v42 = vrot.slane %v19, %v41
  %v43 = vlaneseq
  %v44 = vshrl.u32 %v43, 7
  %v45 = vsub.s32 5, %v44
  %v46 = vrot.slane %v19, %v45
  %v47 = vlaneseq
  %v48 = vshrl.u32 %v47, 7
  %v49 = vsub.s32 6, %v48
  %v50 = vrot.slane %v19, %v49
  %v51 = vlaneseq
  %v52 = vshrl.u32 %v51, 7
  %v53 = vsub.s32 7, %v52
  %v54 = vrot.slane %v19, %v53
  %v55 = vlaneseq
  %v56 = vshrl.u32 %v55, 7
  %v57 = vsub.s32 0, %v56
  %v58 = vrot.slane %v20, %v57
  %v59 = vlaneseq
  %v60 = vshrl.u32 %v59, 7
  %v61 = vsub.s32 1, %v60
  %v62 = vrot.slane %v20, %v61
  %v63 = vlaneseq
  %v64 = vshrl.u32 %v63, 7
  %v65 = vsub.s32 2, %v64
  %v66 = vrot.slane %v20, %v65
  %v67 = vlaneseq
  %v68 = vshrl.u32 %v67, 7
  %v69 = vsub.s32 3, %v68
  %v70 = vrot.slane %v20, %v69
  %v71 = vlaneseq
  %v72 = vshrl.u32 %v71, 7
  %v73 = vsub.s32 4, %v72
  %v74 = vrot.slane %v20, %v73
  %v75 = vlaneseq
  %v76 = vshrl.u32 %v75, 7
  %v77 = vsub.s32 5, %v76
  %v78 = vrot.slane %v20, %v77
  %v79 = vlaneseq
  %v80 = vshrl.u32 %v79, 7
  %v81 = vsub.s32 6, %v80
  %v82 = vrot.slane %v20, %v81
  %v83 = vlaneseq
  %v84 = vshrl.u32 %v83, 7
  %v85 = vsub.s32 7, %v84
  %v86 = vrot.slane %v20, %v85
  %v87 = vcombine.low %v26, %v30
  %v88 = vcombine.low %v34, %v38
  %v89 = vcombine.low %v42, %v46
  %v90 = vcombine.low %v50, %v54
  %v91 = vcombine.low %v58, %v62
  %v92 = vcombine.low %v66, %v70
  %v93 = vcombine.low %v74, %v78
  %v94 = vcombine.low %v82, %v86
  %v103 = vadd.f32 %v11, %v87
  %v104 = vadd.f32 %v12, %v88
  %v105 = vadd.f32 %v13, %v89
  %v106 = vadd.f32 %v14, %v90
  %v107 = vadd.f32 %v15, %v91
  %v108 = vadd.f32 %v16, %v92
  %v109 = vadd.f32 %v17, %v93
  %v110 = vadd.f32 %v18, %v94
  %111 = vst [vmem:[%s2] sm:$0xff] %v103
  %112 = vst [vmem:[%s2 + $0x8] sm:$0xff] %v104
  %113 = vst [vmem:[%s2 + $0x10] sm:$0xff] %v105
  %114 = vst [vmem:[%s2 + $0x18] sm:$0xff] %v106
  %115 = vst [vmem:[%s2 + $0x20] sm:$0xff] %v107
  %116 = vst [vmem:[%s2 + $0x28] sm:$0xff] %v108
  %117 = vst [vmem:[%s2 + $0x30] sm:$0xff] %v109
  %118 = vst [vmem:[%s2 + $0x38] sm:$0xff] %v110
  // Predicated region
  $region10: #{positional_encoding.1} parent=0 // pred_check
    _
  $region11: #{positional_encoding.1} parent=0 // pred_check_branch
    %120 = sbr.rel (0) target = $region13
  $region12: #{positional_encoding.1} parent=0 // pred_region
    _
  $region13: #{positional_encoding.1} parent=0 // pred_fallthru
    _
  // Predicated region
  $region14: #{positional_encoding.1} parent=0 // pred_check
    _
  $region15: #{positional_encoding.1} parent=0 // pred_check_branch
    %122 = sbr.rel (0) target = $region17
  $region16: #{positional_encoding.1} parent=0 // pred_region
    _
  $region17: #{positional_encoding.1} parent=0 // pred_fallthru
    _

</llo_original>
